<compile_context>
chip_gen: v7x
topology: tpu7x:2x2x1
jax: 0.10.0
libtpu: 0.0.40
codegen_flags: <defaults>
</compile_context>

<pallas_src>
import jax
import jax.numpy as jnp
from jax import lax
from jax.experimental import pallas as pl
from jax.experimental.pallas import tpu as pltpu


def _fused_linear_kernel(x_ref, wb_ref, o_ref):
    # x: (M, K), wb: (K+1, N)  [rows 0..K-1 = fused weight, row K = fused bias]
    k = wb_ref.shape[0] - 1
    w = wb_ref[:k, :]          # (K, N)
    b = wb_ref[k:k + 1, :]     # (1, N), broadcast over M
    y = jnp.dot(x_ref[...], w, preferred_element_type=jnp.float32) + b
    o_ref[...] = y.astype(o_ref.dtype)


def fuse_params(w1, b1, w2):
    """Fold the two affine layers into one packed operand. Done once at param-load time.

    w1: (20, 10), b1: (20,), w2: (20, 10)
      y = (x @ w1.T + b1) @ w2  ==  x @ (w1.T @ w2) + (b1 @ w2)
    Contract the shared 20-axis directly (no materialized transpose), then pack the
    fused bias as the last row so the kernel needs a single weight DMA.
    """
    w_fused = lax.dot_general(w1, w2, (((0,), (0,)), ((), ())))   # (10, 10)
    b_fused = jnp.dot(b1, w2).reshape(1, -1)                      # (1, 10)
    return jnp.concatenate([w_fused, b_fused], axis=0)            # (11, 10)


def model_forward(x, wb):
    """x: (M, K); wb: (K+1, N) packed fused weight+bias -> (M, N)."""
    M, K = x.shape
    N = wb.shape[1]

    vmem_spec = pl.BlockSpec(memory_space=pltpu.MemorySpace.VMEM)

    cost = pl.CostEstimate(
        flops=2 * M * K * N + M * N,                   # matmul + bias add
        transcendentals=0,
        bytes_accessed=(M * K + (K + 1) * N + M * N) * 4,
    )

    return pl.pallas_call(
        _fused_linear_kernel,
        out_shape=jax.ShapeDtypeStruct((M, N), x.dtype),
        in_specs=[vmem_spec, vmem_spec],
        out_specs=vmem_spec,
        cost_estimate=cost,
    )(x, wb)


def _reference(x, w1, b1, w2):
    y1 = x @ w1.T + b1
    return y1 @ w2


if __name__ == "__main__":
    key = jax.random.PRNGKey(0)
    kx, kw1, kb1, kw2 = jax.random.split(key, 4)

    # Input as in the original script: torch.randn(6, 10)
    x = jax.random.normal(kx, (6, 10), dtype=jnp.float32)

    # Deterministic parameter init (PyTorch-style uniform(-1/sqrt(fan_in), +1/sqrt(fan_in)))
    bound1 = 1.0 / (10.0 ** 0.5)
    w1 = jax.random.uniform(kw1, (20, 10), jnp.float32, -bound1, bound1)
    b1 = jax.random.uniform(kb1, (20,), jnp.float32, -bound1, bound1)
    w2 = jax.random.uniform(kw2, (20, 10), jnp.float32, -bound1, bound1)

    # One-time algebraic fusion + bias packing (exact in f32 up to rounding order).
    wb = jax.block_until_ready(fuse_params(w1, b1, w2))

    out = model_forward(x, wb)
    jax.block_until_ready(out)

    ref = _reference(x, w1, b1, w2)
    assert out.shape == (6, 10)
    assert jnp.allclose(out, ref, atol=1e-5, rtol=1e-5), "mismatch vs JAX reference"

    print("KERNEL_OK")
</pallas_src>

<mosaic_0001>
module attributes {stable_mosaic.version = 11 : i64} {
  func.func @_fused_linear_kernel(%arg0: memref<6x10xf32, #tpu.memory_space<vmem>>, %arg1: memref<11x10xf32, #tpu.memory_space<vmem>>, %arg2: memref<6x10xf32, #tpu.memory_space<vmem>>) attributes {dimension_semantics = [], scalar_prefetch = 0 : i64, scratch_operands = 0 : i64, tpu.core_type = #tpu.core_type<tc>} {
    %c0 = arith.constant 0 : index
    %c0_0 = arith.constant 0 : index
    %0 = vector.load %arg1[%c0, %c0_0] : memref<11x10xf32, #tpu.memory_space<vmem>>, vector<10x10xf32>
    %c10 = arith.constant 10 : index
    %c0_1 = arith.constant 0 : index
    %1 = vector.load %arg1[%c10, %c0_1] : memref<11x10xf32, #tpu.memory_space<vmem>>, vector<1x10xf32>
    %c0_2 = arith.constant 0 : index
    %c0_3 = arith.constant 0 : index
    %2 = vector.load %arg0[%c0_2, %c0_3] : memref<6x10xf32, #tpu.memory_space<vmem>>, vector<6x10xf32>
    %cst = arith.constant dense<0.000000e+00> : vector<6x10xf32>
    %3 = tpu.matmul %2, %0, %cst {dimension_numbers = #tpu.dot_dimension_numbers<[1], [0], [0], [1], [0, 0, 1, 1], [], []>} : vector<6x10xf32>, vector<10x10xf32>, vector<6x10xf32> -> vector<6x10xf32>
    %4 = vector.broadcast %1 : vector<1x10xf32> to vector<6x10xf32>
    %5 = arith.addf %3, %4 : vector<6x10xf32>
    %c0_4 = arith.constant 0 : index
    %c0_5 = arith.constant 0 : index
    %6 = vector.load %arg2[%c0_4, %c0_5] : memref<6x10xf32, #tpu.memory_space<vmem>>, vector<6x10xf32>
    tpu.vector_store %arg2[%c0_4, %c0_5], %5 {strides = array<i32>} : memref<6x10xf32, #tpu.memory_space<vmem>>, vector<6x10xf32>,
    return
  }
}

</mosaic_0001>

<llo_original>
// kernel: tpu_custom_call.1
$region0: #{tpu_custom_call.1}
  #allocation0 [shape = 'u32[]', space=smem, size = 0x4, offset = 0x4, fixed_abs, tag = 'smem constant byte address 0x4 - core index']
  #allocation1 [shape = 'u32[144,128]{1,0:T(1,128)}', space=vmem, size = 0x12000, scoped, tag = 'internal scratch']
  %s0 = inlined_call_operand.hbm [shape: f32[6,10], index: 0, kind: input, shape index: {}]
  %s1 = inlined_call_operand.hbm [shape: f32[11,10], index: 1, kind: input, shape index: {}]
  %s2 = inlined_call_operand.hbm [shape: f32[6,10], index: 2, kind: output, shape index: {}]
  %s3 = sld [smem:[#allocation0]]
  $region26: #{tpu_custom_call.1} parent=0
    _
  %s5 = ssub.s32 1, %s3
  %s6 = scalar_select 0, %s5, %s3
  $region1: #{tpu_custom_call.1} parent=0
    #allocation2 [shape = 'u8[4096]{0}', space=vmem, size = 0x1000, scoped, tag = 'input window, operand 0, single buffered']
    #allocation3 [shape = 's32[1]{0}', space=sflag, size = 0x4, scoped, tag = 'scoped memory for tpu_custom_call.1']
    #allocation4 [shape = 's32[1]{0}', space=sflag, size = 0x4, scoped, tag = 'scoped memory for tpu_custom_call.1']
    #allocation5 [shape = 'u8[8192]{0}', space=vmem, size = 0x2000, scoped, tag = 'input window, operand 1, single buffered']
    #allocation6 [shape = 's32[1]{0}', space=sflag, size = 0x4, scoped, tag = 'scoped memory for tpu_custom_call.1']
    #allocation7 [shape = 'u8[4096]{0}', space=vmem, size = 0x1000, scoped, tag = 'output window, operand 0, single buffered']
    %7 = vsyncpa [#allocation3], 0
    %8 = vsyncpa [#allocation6], 0
    %9 = vsyncpa [#allocation4], 0
    // Predicated region
    $region2: #{tpu_custom_call.1} parent=1 // pred_check
      _
    $region3: #{tpu_custom_call.1} parent=1 // pred_check_branch
      %11 = sbr.rel (0) target = $region5
    $region4: #{tpu_custom_call.1} parent=1 // pred_region
      %s13 = ssub.s32 128, 128
      %14 = vsyncadd [#allocation3], %s13
      %s16 = sshll.u32 [#allocation2], 4
      %s17 = int_to_ptr.vmem [resolvable:$true] %s16
      %19 = dma.hbm_to_vmem [thread:$0]  %s0, 128, %s17, [#allocation3]
    $region5: #{tpu_custom_call.1} parent=1 // pred_fallthru
      _
    // Predicated region
    $region6: #{tpu_custom_call.1} parent=1 // pred_check
      _
    $region7: #{tpu_custom_call.1} parent=1 // pred_check_branch
      %21 = sbr.rel (0) target = $region9
    $region8: #{tpu_custom_call.1} parent=1 // pred_region
      %s23 = ssub.s32 256, 256
      %24 = vsyncadd [#allocation6], %s23
      %s25 = sshll.u32 [#allocation5], 4
      %s26 = int_to_ptr.vmem [resolvable:$true] %s25
      %31 = dma.hbm_to_vmem [thread:$0]  %s1, 256, %s26, [#allocation6], 128, 128, 8
    $region9: #{tpu_custom_call.1} parent=1 // pred_fallthru
      _
    // Predicated region
    $region10: #{tpu_custom_call.1} parent=1 // pred_check
      _
    $region11: #{tpu_custom_call.1} parent=1 // pred_check_branch
      %33 = sbr.rel (0) target = $region13
    $region12: #{tpu_custom_call.1} parent=1 // pred_region
      %34 = dma.done [#allocation3], 128
    $region13: #{tpu_custom_call.1} parent=1 // pred_fallthru
      _
    // Predicated region
    $region14: #{tpu_custom_call.1} parent=1 // pred_check
      _
    $region15: #{tpu_custom_call.1} parent=1 // pred_check_branch
      %36 = sbr.rel (0) target = $region17
    $region16: #{tpu_custom_call.1} parent=1 // pred_region
      %37 = dma.done [#allocation6], 256
    $region17: #{tpu_custom_call.1} parent=1 // pred_fallthru
      _
    %v38 = vld [vmem:[#allocation5] sm:$0xff]
    %v39 = vld [vmem:[#allocation5 + $0x8] sm:$0x3]
    %v40 = vld [vmem:[#allocation5 + $0xa] sm:$0x1]
    %v41 = vld [vmem:[#allocation2] sm:$0x3f]
    %v42 = vlaneseq
    %v43 = vshrl.u32 %v42, 7
    %v44 = vsub.s32 0, %v43
    %v45 = vrot.slane %v40, %v44
    %vm46 = vcmask 80896
    %v48 = vsel %vm46, %v41, 0
    %vm50 = vcmask 1041408
    %v52 = vsel %vm50, %v39, 0
    %54 = vmatprep.subr.mxu0 0.0
    %55 = vmatpush1.msra.mxu0 %v38
    %56 = vmatprep.subr.mxu0 0.0
    %57 = vmatpush1.msra.mxu0 %v52
    %58 = vmatprep.subr.mxu0 0.0
    %59 = vmatpush1.msra.mxu0 0.0
    %60 = vmatprep.subr.mxu0 0.0
    %61 = vmatpush1.msra.mxu0 0.0
    %62 = vmatprep.subr.mxu0 0.0
    %63 = vmatpush1.msra.mxu0 0.0
    %64 = vmatprep.subr.mxu0 0.0
    %65 = vmatpush1.msra.mxu0 0.0
    %66 = vmatprep.subr.mxu0 0.0
    %67 = vmatpush1.msra.mxu0 0.0
    %68 = vmatprep.subr.mxu0 0.0
    %69 = vmatpush1.msra.mxu0 0.0
    %70 = vmatprep.subr.mxu0 0.0
    %71 = vmatpush1.msra.mxu0 0.0
    %72 = vmatprep.subr.mxu0 0.0
    %73 = vmatpush1.msra.mxu0 0.0
    %74 = vmatprep.subr.mxu0 0.0
    %75 = vmatpush1.msra.mxu0 0.0
    %76 = vmatprep.subr.mxu0 0.0
    %77 = vmatpush1.msra.mxu0 0.0
    %78 = vmatprep.subr.mxu0 0.0
    %79 = vmatpush1.msra.mxu0 0.0
    %80 = vmatprep.subr.mxu0 0.0
    %81 = vmatpush1.msra.mxu0 0.0
    %82 = vmatprep.subr.mxu0 0.0
    %83 = vmatpush1.msra.mxu0 0.0
    %84 = vmatprep.subr.mxu0 0.0
    %85 = vmatpush1.msra.mxu0 0.0
    %86 = vmatprep.subr.mxu0 0.0
    %87 = vmatpush1.msra.mxu0 0.0
    %88 = vmatprep.subr.mxu0 0.0
    %89 = vmatpush1.msra.mxu0 0.0
    %90 = vmatprep.subr.mxu0 0.0
    %91 = vmatpush1.msra.mxu0 0.0
    %92 = vmatprep.subr.mxu0 0.0
    %93 = vmatpush1.msra.mxu0 0.0
    %94 = vmatprep.subr.mxu0 0.0
    %95 = vmatpush1.msra.mxu0 0.0
    %96 = vmatprep.subr.mxu0 0.0
    %97 = vmatpush1.msra.mxu0 0.0
    %98 = vmatprep.subr.mxu0 0.0
    %99 = vmatpush1.msra.mxu0 0.0
    %100 = vmatprep.subr.mxu0 0.0
    %101 = vmatpush1.msra.mxu0 0.0
    %102 = vmatprep.subr.mxu0 0.0
    %103 = vmatpush1.msra.mxu0 0.0
    %104 = vmatprep.subr.mxu0 0.0
    %105 = vmatpush1.msra.mxu0 0.0
    %106 = vmatprep.subr.mxu0 0.0
    %107 = vmatpush1.msra.mxu0 0.0
    %108 = vmatprep.subr.mxu0 0.0
    %109 = vmatpush1.msra.mxu0 0.0
    %110 = vmatprep.subr.mxu0 0.0
    %111 = vmatpush1.msra.mxu0 0.0
    %112 = vmatprep.subr.mxu0 0.0
    %113 = vmatpush1.msra.mxu0 0.0
    %114 = vmatprep.subr.mxu0 0.0
    %115 = vmatpush1.msra.mxu0 0.0
    %116 = vmatprep.subr.mxu0 0.0
    %117 = vmatpush1.msra.mxu0 0.0
    %118 = vmatprep.mubr.f32.mxu0 0.0
    %119 = vmatmul.mubr.f32.gmra.mrb[0].mxu0 %v48
    %v120 = vpop.f32.mrb[0].mxu0
    %v121 = vadd.f32 %v45, %v120
    %v122 = vpop.f32.mrb[0].mxu0
    %123 = vdwg.mxu0
    %vm124 = vcmask 78848
    %125 = vst.msk [vmem:[#allocation7] sm:$0x3f] %vm124, %v121
    // Predicated region
    $region18: #{tpu_custom_call.1} parent=1 // pred_check
      _
    $region19: #{tpu_custom_call.1} parent=1 // pred_check_branch
      %127 = sbr.rel (0) target = $region21
    $region20: #{tpu_custom_call.1} parent=1 // pred_region
      %s129 = ssub.s32 128, 128
      %130 = vsyncadd [#allocation4], %s129
      %s132 = sshll.u32 [#allocation7], 4
      %s133 = int_to_ptr.vmem [resolvable:$true] %s132
      %135 = dma.vmem_to_hbm [thread:$0]  %s133, 128, %s2, [#allocation4]
    $region21: #{tpu_custom_call.1} parent=1 // pred_fallthru
      _
    // Predicated region
    $region22: #{tpu_custom_call.1} parent=1 // pred_check
      _
    $region23: #{tpu_custom_call.1} parent=1 // pred_check_branch
      %137 = sbr.rel (0) target = $region25
    $region24: #{tpu_custom_call.1} parent=1 // pred_region
      %138 = dma.done [#allocation4], 128
    $region25: #{tpu_custom_call.1} parent=1 // pred_fallthru
      _
    %139 = vsyncpa [#allocation3], 1
    %140 = vsyncpa [#allocation6], 1
    %141 = vsyncpa [#allocation4], 1

</llo_original>
